<compile_context>
chip_gen: v7x
topology: tpu7x:2x2x1
jax: 0.10.0
libtpu: 0.0.40
codegen_flags: <defaults>
</compile_context>

<pallas_src>
import functools

import jax
import jax.numpy as jnp
from jax.experimental import pallas as pl
from jax.experimental.pallas import tpu as pltpu

_LANE = 128   # lane width  (last dim granularity)
_SUB = 8      # sublane width (second-to-last dim granularity)


def _round_up(x, m):
    return (x + m - 1) // m * m


def _mlp_kernel(x_ref, w1_ref, b1_ref, w2_ref, b2_ref, o_ref):
    # Hidden layer: bf16 operands on the MXU, f32 accumulation.
    x_bf = x_ref[...].astype(jnp.bfloat16)
    w1_bf = w1_ref[...].astype(jnp.bfloat16)
    h = jnp.dot(x_bf, w1_bf, preferred_element_type=jnp.float32)
    # Epilogue kept in f32 (v5e VPU has no bf16): bias add + ReLU.
    h = jnp.maximum(h + b1_ref[...], 0.0)

    # Output layer: bf16 operands on the MXU, f32 accumulation.
    w2_bf = w2_ref[...].astype(jnp.bfloat16)
    y = jnp.dot(h.astype(jnp.bfloat16), w2_bf, preferred_element_type=jnp.float32)
    # Lane-dense (TM, N_pad) store — full-width unmasked vst.
    o_ref[...] = (y + b2_ref[...]).astype(o_ref.dtype)


@functools.partial(jax.jit, static_argnames=("tm",))
def neural_net_forward(x, w1, b1, w2, b2, *, tm=512):
    """Forward pass of NeuralNet as a single Pallas kernel.

    x : (B, input_size)  float32
    w1: (input_size, hidden_size)   (transpose of torch's hidden.weight)
    b1: (hidden_size,)
    w2: (hidden_size, output_size)  (transpose of torch's output.weight)
    b2: (output_size,)
    returns (B, output_size) float32
    """
    B, K = x.shape
    H = w1.shape[1]
    N = w2.shape[1]

    # --- Pad to TPU-friendly shapes (zero padding keeps the matmul exact). ---
    K_pad = _round_up(K, _LANE)
    H_pad = _round_up(H, _LANE)
    N_pad = _round_up(N, _LANE)

    B_pad = _round_up(B, _SUB)
    TM = min(tm, B_pad)            # rows of x / y per grid step
    B_pad = _round_up(B_pad, TM)   # make the batch divisible by the tile
    grid_m = B_pad // TM

    f32 = jnp.float32
    x_p = jnp.zeros((B_pad, K_pad), f32).at[:B, :K].set(x.astype(f32))
    w1_p = jnp.zeros((K_pad, H_pad), f32).at[:K, :H].set(w1.astype(f32))
    b1_p = jnp.zeros((1, H_pad), f32).at[0, :H].set(b1.astype(f32))
    w2_p = jnp.zeros((H_pad, N_pad), f32).at[:H, :N].set(w2.astype(f32))
    b2_p = jnp.zeros((1, N_pad), f32).at[0, :N].set(b2.astype(f32))

    flops = 2 * B_pad * (K_pad * H_pad + H_pad * N_pad)
    bytes_accessed = 4 * (
        x_p.size + w1_p.size + b1_p.size + w2_p.size + b2_p.size + B_pad * N_pad
    )

    out_padded = pl.pallas_call(
        _mlp_kernel,
        out_shape=jax.ShapeDtypeStruct((B_pad, N_pad), f32),
        grid_spec=pltpu.PrefetchScalarGridSpec(
            num_scalar_prefetch=0,
            grid=(grid_m,),
            in_specs=[
                # x: tiled over the batch grid axis.
                pl.BlockSpec((TM, K_pad), lambda i: (i, 0)),
                # weights / biases: grid-invariant (constant index_map).
                pl.BlockSpec((K_pad, H_pad), lambda i: (0, 0)),
                pl.BlockSpec((1, H_pad), lambda i: (0, 0)),
                pl.BlockSpec((H_pad, N_pad), lambda i: (0, 0)),
                pl.BlockSpec((1, N_pad), lambda i: (0, 0)),
            ],
            out_specs=pl.BlockSpec((TM, N_pad), lambda i: (i, 0)),
        ),
        compiler_params=pltpu.CompilerParams(
            dimension_semantics=("parallel",),
        ),
        cost_estimate=pl.CostEstimate(
            flops=flops, transcendentals=0, bytes_accessed=bytes_accessed
        ),
    )(x_p, w1_p, b1_p, w2_p, b2_p)

    # Slice the padding away outside the kernel.
    return out_padded[:B, :N]


def reference_forward(x, w1, b1, w2, b2):
    h = jnp.maximum(x @ w1 + b1, 0.0)
    return h @ w2 + b2


if __name__ == "__main__":
    # CartPole-like sizes: 4-dim observation, 32 hidden units, 2 actions.
    input_size, hidden_size, output_size = 4, 32, 2
    batch = 8

    key = jax.random.PRNGKey(0)
    kx, kw1, kb1, kw2, kb2 = jax.random.split(key, 5)

    x = jax.random.normal(kx, (batch, input_size), dtype=jnp.float32)

    # Deterministic synthetic parameters (nn.Linear weights stored as weight.T).
    w1 = jax.random.normal(kw1, (input_size, hidden_size), dtype=jnp.float32) * 0.1
    b1 = jax.random.normal(kb1, (hidden_size,), dtype=jnp.float32) * 0.1
    w2 = jax.random.normal(kw2, (hidden_size, output_size), dtype=jnp.float32) * 0.1
    b2 = jax.random.normal(kb2, (output_size,), dtype=jnp.float32) * 0.1

    y = neural_net_forward(x, w1, b1, w2, b2)
    jax.block_until_ready(y)

    y_ref = reference_forward(x, w1, b1, w2, b2)
    assert y.shape == (batch, output_size)
    # bf16 matmul operands with f32 accumulation -> compare with bf16-level tolerance.
    assert jnp.allclose(y, y_ref, atol=3e-2, rtol=3e-2), (
        f"max abs err {jnp.max(jnp.abs(y - y_ref))}"
    )

    print("KERNEL_OK")
</pallas_src>

<mosaic_0001>
module attributes {stable_mosaic.version = 11 : i64} {
  func.func @_mlp_kernel(%arg0: i32, %arg1: memref<8x128xf32, #tpu.memory_space<vmem>>, %arg2: memref<128x128xf32, #tpu.memory_space<vmem>>, %arg3: memref<1x128xf32, #tpu.memory_space<vmem>>, %arg4: memref<128x128xf32, #tpu.memory_space<vmem>>, %arg5: memref<1x128xf32, #tpu.memory_space<vmem>>, %arg6: memref<8x128xf32, #tpu.memory_space<vmem>>) attributes {dimension_semantics = [#tpu.dimension_semantics<parallel>], iteration_bounds = array<i64: 1>, scalar_prefetch = 0 : i64, scratch_operands = 0 : i64, tpu.core_type = #tpu.core_type<tc>, window_params = [{transform_indices = @transform_0, window_bounds = array<i64: 8, 128>}, {pipeline_mode = #tpu.pipeline_mode<synchronous>, transform_indices = @transform_1, window_bounds = array<i64: 128, 128>}, {pipeline_mode = #tpu.pipeline_mode<synchronous>, transform_indices = @transform_2, window_bounds = array<i64: 1, 128>}, {pipeline_mode = #tpu.pipeline_mode<synchronous>, transform_indices = @transform_3, window_bounds = array<i64: 128, 128>}, {pipeline_mode = #tpu.pipeline_mode<synchronous>, transform_indices = @transform_4, window_bounds = array<i64: 1, 128>}, {transform_indices = @transform_5, window_bounds = array<i64: 8, 128>}]} {
    %c0 = arith.constant 0 : index
    %c0_0 = arith.constant 0 : index
    %0 = vector.load %arg1[%c0, %c0_0] : memref<8x128xf32, #tpu.memory_space<vmem>>, vector<8x128xf32>
    %1 = arith.truncf %0 : vector<8x128xf32> to vector<8x128xbf16>
    %c0_1 = arith.constant 0 : index
    %c0_2 = arith.constant 0 : index
    %2 = vector.load %arg2[%c0_1, %c0_2] : memref<128x128xf32, #tpu.memory_space<vmem>>, vector<128x128xf32>
    %3 = arith.truncf %2 : vector<128x128xf32> to vector<128x128xbf16>
    %cst = arith.constant dense<0.000000e+00> : vector<8x128xf32>
    %4 = tpu.matmul %1, %3, %cst {dimension_numbers = #tpu.dot_dimension_numbers<[1], [0], [0], [1], [0, 0, 1, 1], [], []>} : vector<8x128xbf16>, vector<128x128xbf16>, vector<8x128xf32> -> vector<8x128xf32>
    %c0_3 = arith.constant 0 : index
    %c0_4 = arith.constant 0 : index
    %5 = vector.load %arg3[%c0_3, %c0_4] : memref<1x128xf32, #tpu.memory_space<vmem>>, vector<1x128xf32>
    %6 = vector.broadcast %5 : vector<1x128xf32> to vector<8x128xf32>
    %7 = arith.addf %4, %6 : vector<8x128xf32>
    %cst_5 = arith.constant 0.000000e+00 : f32
    %8 = vector.broadcast %cst_5 : f32 to vector<8x128xf32>
    %9 = arith.maximumf %7, %8 : vector<8x128xf32>
    %c0_6 = arith.constant 0 : index
    %c0_7 = arith.constant 0 : index
    %10 = vector.load %arg4[%c0_6, %c0_7] : memref<128x128xf32, #tpu.memory_space<vmem>>, vector<128x128xf32>
    %11 = arith.truncf %10 : vector<128x128xf32> to vector<128x128xbf16>
    %12 = arith.truncf %9 : vector<8x128xf32> to vector<8x128xbf16>
    %cst_8 = arith.constant dense<0.000000e+00> : vector<8x128xf32>
    %13 = tpu.matmul %12, %11, %cst_8 {dimension_numbers = #tpu.dot_dimension_numbers<[1], [0], [0], [1], [0, 0, 1, 1], [], []>} : vector<8x128xbf16>, vector<128x128xbf16>, vector<8x128xf32> -> vector<8x128xf32>
    %c0_9 = arith.constant 0 : index
    %c0_10 = arith.constant 0 : index
    %14 = vector.load %arg5[%c0_9, %c0_10] : memref<1x128xf32, #tpu.memory_space<vmem>>, vector<1x128xf32>
    %15 = vector.broadcast %14 : vector<1x128xf32> to vector<8x128xf32>
    %16 = arith.addf %13, %15 : vector<8x128xf32>
    %c0_11 = arith.constant 0 : index
    %c0_12 = arith.constant 0 : index
    %17 = vector.load %arg6[%c0_11, %c0_12] : memref<8x128xf32, #tpu.memory_space<vmem>>, vector<8x128xf32>
    tpu.vector_store %arg6[%c0_11, %c0_12], %16 {strides = array<i32>} : memref<8x128xf32, #tpu.memory_space<vmem>>, vector<8x128xf32>,
    return
  }
  func.func @transform_0(%arg0: i32) -> (i32, i32) {
    %c0_i32 = arith.constant 0 : i32
    %c0_i32_0 = arith.constant 0 : i32
    return %arg0, %c0_i32 : i32, i32
  }
  func.func @transform_1(%arg0: i32) -> (i32, i32) {
    %c0_i32 = arith.constant 0 : i32
    %c0_i32_0 = arith.constant 0 : i32
    %c0_i32_1 = arith.constant 0 : i32
    return %c0_i32, %c0_i32_0 : i32, i32
  }
  func.func @transform_2(%arg0: i32) -> (i32, i32) {
    %c0_i32 = arith.constant 0 : i32
    %c0_i32_0 = arith.constant 0 : i32
    %c0_i32_1 = arith.constant 0 : i32
    return %c0_i32, %c0_i32_0 : i32, i32
  }
  func.func @transform_3(%arg0: i32) -> (i32, i32) {
    %c0_i32 = arith.constant 0 : i32
    %c0_i32_0 = arith.constant 0 : i32
    %c0_i32_1 = arith.constant 0 : i32
    return %c0_i32, %c0_i32_0 : i32, i32
  }
  func.func @transform_4(%arg0: i32) -> (i32, i32) {
    %c0_i32 = arith.constant 0 : i32
    %c0_i32_0 = arith.constant 0 : i32
    %c0_i32_1 = arith.constant 0 : i32
    return %c0_i32, %c0_i32_0 : i32, i32
  }
  func.func @transform_5(%arg0: i32) -> (i32, i32) {
    %c0_i32 = arith.constant 0 : i32
    %c0_i32_0 = arith.constant 0 : i32
    return %arg0, %c0_i32 : i32, i32
  }
}

</mosaic_0001>

<llo_original>
// kernel: neural_net_forward.1
$region0: #{neural_net_forward.1}
  #allocation0 [shape = 'u32[]', space=smem, size = 0x4, offset = 0x4, fixed_abs, tag = 'smem constant byte address 0x4 - core index']
  #allocation1 [shape = 'u32[144,128]{1,0:T(1,128)}', space=vmem, size = 0x12000, scoped, tag = 'internal scratch']
  %s0 = inlined_call_operand.vmem [shape: f32[8,128], index: 0, kind: input, shape index: {}]
  %s1 = inlined_call_operand.vmem [shape: f32[128,128], index: 1, kind: input, shape index: {}]
  %s2 = inlined_call_operand.vmem [shape: f32[1,128], index: 2, kind: input, shape index: {}]
  %s3 = inlined_call_operand.vmem [shape: f32[128,128], index: 3, kind: input, shape index: {}]
  %s4 = inlined_call_operand.vmem [shape: f32[1,128], index: 4, kind: input, shape index: {}]
  %s5 = inlined_call_operand.vmem [shape: f32[8,128], index: 5, kind: output, shape index: {}]
  %s6 = sld [smem:[#allocation0]]
  $region30: #{neural_net_forward.1} parent=0
    _
  %s8 = ssub.s32 1, %s6
  %s9 = scalar_select 0, %s8, %s6
  // Predicated region
  $region2: #{neural_net_forward.1} parent=0 // pred_check
    _
  $region3: #{neural_net_forward.1} parent=0 // pred_check_branch
    %11 = sbr.rel (0) target = $region5
  $region4: #{neural_net_forward.1} parent=0 // pred_region
    _
  $region5: #{neural_net_forward.1} parent=0 // pred_fallthru
    _
  // Predicated region
  $region6: #{neural_net_forward.1} parent=0 // pred_check
    _
  $region7: #{neural_net_forward.1} parent=0 // pred_check_branch
    %13 = sbr.rel (0) target = $region9
  $region8: #{neural_net_forward.1} parent=0 // pred_region
    _
  $region9: #{neural_net_forward.1} parent=0 // pred_fallthru
    _
  // Predicated region
  $region10: #{neural_net_forward.1} parent=0 // pred_check
    _
  $region11: #{neural_net_forward.1} parent=0 // pred_check_branch
    %15 = sbr.rel (0) target = $region13
  $region12: #{neural_net_forward.1} parent=0 // pred_region
    _
  $region13: #{neural_net_forward.1} parent=0 // pred_fallthru
    _
  // Predicated region
  $region14: #{neural_net_forward.1} parent=0 // pred_check
    _
  $region15: #{neural_net_forward.1} parent=0 // pred_check_branch
    %17 = sbr.rel (0) target = $region17
  $region16: #{neural_net_forward.1} parent=0 // pred_region
    _
  $region17: #{neural_net_forward.1} parent=0 // pred_fallthru
    _
  // Predicated region
  $region18: #{neural_net_forward.1} parent=0 // pred_check
    _
  $region19: #{neural_net_forward.1} parent=0 // pred_check_branch
    %19 = sbr.rel (0) target = $region21
  $region20: #{neural_net_forward.1} parent=0 // pred_region
    _
  $region21: #{neural_net_forward.1} parent=0 // pred_fallthru
    _
  %v21 = vld [vmem:[%s0] sm:$0xff]
  %v22 = vpack.c.bf16 %v21, %v21
  %v23 = vld [vmem:[%s1] sm:$0xff]
  %v24 = vld [vmem:[%s1 + $0x8] sm:$0xff]
  %v25 = vld [vmem:[%s1 + $0x10] sm:$0xff]
  %v26 = vld [vmem:[%s1 + $0x18] sm:$0xff]
  %v27 = vld [vmem:[%s1 + $0x20] sm:$0xff]
  %v28 = vld [vmem:[%s1 + $0x28] sm:$0xff]
  %v29 = vld [vmem:[%s1 + $0x30] sm:$0xff]
  %v30 = vld [vmem:[%s1 + $0x38] sm:$0xff]
  %v31 = vld [vmem:[%s1 + $0x40] sm:$0xff]
  %v32 = vld [vmem:[%s1 + $0x48] sm:$0xff]
  %v33 = vld [vmem:[%s1 + $0x50] sm:$0xff]
  %v34 = vld [vmem:[%s1 + $0x58] sm:$0xff]
  %v35 = vld [vmem:[%s1 + $0x60] sm:$0xff]
  %v36 = vld [vmem:[%s1 + $0x68] sm:$0xff]
  %v37 = vld [vmem:[%s1 + $0x70] sm:$0xff]
  %v38 = vld [vmem:[%s1 + $0x78] sm:$0xff]
  %v39 = vpack.c.bf16 %v24, %v23
  %v40 = vpack.c.bf16 %v26, %v25
  %v41 = vpack.c.bf16 %v28, %v27
  %v42 = vpack.c.bf16 %v30, %v29
  %v43 = vpack.c.bf16 %v32, %v31
  %v44 = vpack.c.bf16 %v34, %v33
  %v45 = vpack.c.bf16 %v36, %v35
  %v46 = vpack.c.bf16 %v38, %v37
  %v47 = vld [vmem:[%s2] sm:$0x1]
  %v49 = vlaneseq
  %v50 = vshrl.u32 %v49, 7
  %v51 = vsub.s32 0, %v50
  %v52 = vrot.slane %v47, %v51
  %54 = vmatprep.subr.bf16.mxu0 0
  %55 = vmatpush1.bf16.msra.mxu0 %v39
  %56 = vmatprep.subr.bf16.mxu0 0
  %57 = vmatpush1.bf16.msra.mxu0 %v40
  %58 = vmatprep.subr.bf16.mxu0 0
  %59 = vmatpush1.bf16.msra.mxu0 %v41
  %60 = vmatprep.subr.bf16.mxu0 0
  %61 = vmatpush1.bf16.msra.mxu0 %v42
  %62 = vmatprep.subr.bf16.mxu0 0
  %63 = vmatpush1.bf16.msra.mxu0 %v43
  %64 = vmatprep.subr.bf16.mxu0 0
  %65 = vmatpush1.bf16.msra.mxu0 %v44
  %66 = vmatprep.subr.bf16.mxu0 0
  %67 = vmatpush1.bf16.msra.mxu0 %v45
  %68 = vmatprep.subr.bf16.mxu0 0
  %69 = vmatpush1.bf16.msra.mxu0 %v46
  %70 = vmatprep.subr.bf16.mxu0 0
  %71 = vmatpush1.bf16.msra.mxu0 0
  %72 = vmatprep.subr.bf16.mxu0 0
  %73 = vmatpush1.bf16.msra.mxu0 0
  %74 = vmatprep.subr.bf16.mxu0 0
  %75 = vmatpush1.bf16.msra.mxu0 0
  %76 = vmatprep.subr.bf16.mxu0 0
  %77 = vmatpush1.bf16.msra.mxu0 0
  %78 = vmatprep.subr.bf16.mxu0 0
  %79 = vmatpush1.bf16.msra.mxu0 0
  %80 = vmatprep.subr.bf16.mxu0 0
  %81 = vmatpush1.bf16.msra.mxu0 0
  %82 = vmatprep.subr.bf16.mxu0 0
  %83 = vmatpush1.bf16.msra.mxu0 0
  %84 = vmatprep.subr.bf16.mxu0 0
  %85 = vmatpush1.bf16.msra.mxu0 0
  %86 = vmatprep.mubr.bf16.mxu0 0
  %87 = vmatmul.mubr.bf16.gmra.mrb[0].mxu0 %v22
  %v88 = vpop.f32.mrb[0].mxu0
  %v89 = vadd.f32 %v52, %v88
  %v90 = vpop.f32.mrb[0].mxu0
  %v91 = vpop.f32.mrb[0].mxu0
  %v92 = vpop.f32.mrb[0].mxu0
  %93 = vdwg.mxu0
  %v94 = vmax.f32 %v89, 0.0
  %v95 = vld [vmem:[%s3] sm:$0xff]
  %v96 = vld [vmem:[%s3 + $0x8] sm:$0xff]
  %v97 = vld [vmem:[%s3 + $0x10] sm:$0xff]
  %v98 = vld [vmem:[%s3 + $0x18] sm:$0xff]
  %v99 = vld [vmem:[%s3 + $0x20] sm:$0xff]
  %v100 = vld [vmem:[%s3 + $0x28] sm:$0xff]
  %v101 = vld [vmem:[%s3 + $0x30] sm:$0xff]
  %v102 = vld [vmem:[%s3 + $0x38] sm:$0xff]
  %v103 = vld [vmem:[%s3 + $0x40] sm:$0xff]
  %v104 = vld [vmem:[%s3 + $0x48] sm:$0xff]
  %v105 = vld [vmem:[%s3 + $0x50] sm:$0xff]
  %v106 = vld [vmem:[%s3 + $0x58] sm:$0xff]
  %v107 = vld [vmem:[%s3 + $0x60] sm:$0xff]
  %v108 = vld [vmem:[%s3 + $0x68] sm:$0xff]
  %v109 = vld [vmem:[%s3 + $0x70] sm:$0xff]
  %v110 = vld [vmem:[%s3 + $0x78] sm:$0xff]
  %v111 = vpack.c.bf16 %v96, %v95
  %v112 = vpack.c.bf16 %v98, %v97
  %v113 = vpack.c.bf16 %v100, %v99
  %v114 = vpack.c.bf16 %v102, %v101
  %v115 = vpack.c.bf16 %v104, %v103
  %v116 = vpack.c.bf16 %v106, %v105
  %v117 = vpack.c.bf16 %v108, %v107
  %v118 = vpack.c.bf16 %v110, %v109
  %v119 = vpack.c.bf16 %v94, %v94
  %v120 = vld [vmem:[%s4] sm:$0x1]
  %v122 = vlaneseq
  %v123 = vshrl.u32 %v122, 7
  %v124 = vsub.s32 0, %v123
  %v125 = vrot.slane %v120, %v124
  %127 = vmatprep.subr.bf16.mxu0 0
  %128 = vmatpush1.bf16.msra.mxu0 %v111
  %129 = vmatprep.subr.bf16.mxu0 0
  %130 = vmatpush1.bf16.msra.mxu0 %v112
  %131 = vmatprep.subr.bf16.mxu0 0
  %132 = vmatpush1.bf16.msra.mxu0 %v113
  %133 = vmatprep.subr.bf16.mxu0 0
  %134 = vmatpush1.bf16.msra.mxu0 %v114
  %135 = vmatprep.subr.bf16.mxu0 0
  %136 = vmatpush1.bf16.msra.mxu0 %v115
  %137 = vmatprep.subr.bf16.mxu0 0
  %138 = vmatpush1.bf16.msra.mxu0 %v116
  %139 = vmatprep.subr.bf16.mxu0 0
  %140 = vmatpush1.bf16.msra.mxu0 %v117
  %141 = vmatprep.subr.bf16.mxu0 0
  %142 = vmatpush1.bf16.msra.mxu0 %v118
  %143 = vmatprep.subr.bf16.mxu0 0
  %144 = vmatpush1.bf16.msra.mxu0 0
  %145 = vmatprep.subr.bf16.mxu0 0
  %146 = vmatpush1.bf16.msra.mxu0 0
  %147 = vmatprep.subr.bf16.mxu0 0
  %148 = vmatpush1.bf16.msra.mxu0 0
  %149 = vmatprep.subr.bf16.mxu0 0
  %150 = vmatpush1.bf16.msra.mxu0 0
  %151 = vmatprep.subr.bf16.mxu0 0
  %152 = vmatpush1.bf16.msra.mxu0 0
  %153 = vmatprep.subr.bf16.mxu0 0
  %154 = vmatpush1.bf16.msra.mxu0 0
  %155 = vmatprep.subr.bf16.mxu0 0
  %156 = vmatpush1.bf16.msra.mxu0 0
  %157 = vmatprep.subr.bf16.mxu0 0
  %158 = vmatpush1.bf16.msra.mxu0 0
  %159 = vmatprep.mubr.bf16.mxu0 0
  %160 = vmatmul.mubr.bf16.gmra.mrb[0].mxu0 %v119
  %v161 = vpop.f32.mrb[0].mxu0
  %v162 = vadd.f32 %v125, %v161
  %v163 = vpop.f32.mrb[0].mxu0
  %v164 = vpop.f32.mrb[0].mxu0
  %v165 = vpop.f32.mrb[0].mxu0
  %166 = vdwg.mxu0
  %167 = vst [vmem:[%s5] sm:$0xff] %v162
  // Predicated region
  $region22: #{neural_net_forward.1} parent=0 // pred_check
    _
  $region23: #{neural_net_forward.1} parent=0 // pred_check_branch
    %169 = sbr.rel (0) target = $region25
  $region24: #{neural_net_forward.1} parent=0 // pred_region
    _
  $region25: #{neural_net_forward.1} parent=0 // pred_fallthru
    _
  // Predicated region
  $region26: #{neural_net_forward.1} parent=0 // pred_check
    _
  $region27: #{neural_net_forward.1} parent=0 // pred_check_branch
    %171 = sbr.rel (0) target = $region29
  $region28: #{neural_net_forward.1} parent=0 // pred_region
    _
  $region29: #{neural_net_forward.1} parent=0 // pred_fallthru
    _

</llo_original>
